<compile_context>
chip_gen: v6e
topology: v6e:2x2x1
jax: 0.10.0
libtpu: 0.0.40
codegen_flags: <defaults>
</compile_context>

<pallas_src>
import jax
import jax.numpy as jnp
from jax import lax
from jax.experimental import pallas as pl
from jax.experimental.pallas import tpu as pltpu


# ------------------------------ small helpers -------------------------------
def _round_up(x, m):
    return ((x + m - 1) // m) * m


def _pad_cols(a, cols):
    pad = cols - a.shape[-1]
    if pad:
        a = jnp.pad(a, ((0, 0), (0, pad)))
    return a


# ------------------------------ Pallas kernels ------------------------------
def _linear_kernel(x_ref, w_ref, b_ref, o_ref):
    # x_ref: (tm, K) bf16   w_ref: (K, Np) bf16   b_ref: (1, Np) f32
    acc = jnp.dot(x_ref[...], w_ref[...], preferred_element_type=jnp.float32)
    o_ref[...] = (acc + b_ref[...]).astype(o_ref.dtype)


def _attention_kernel(q_ref, k_ref, v_ref, o_ref):
    # Blocks: (1, N, D). Softmax scale is already folded into q.
    q = q_ref[0]                                     # (N, D) bf16
    k = k_ref[0]
    v = v_ref[0]
    # scores = q @ k^T  (contract last dims of both -> no explicit transpose)
    s = lax.dot_general(q, k, (((1,), (1,)), ((), ())),
                        preferred_element_type=jnp.float32)      # (N, N) f32
    m = jnp.max(s, axis=-1, keepdims=True)
    e = jnp.exp(s - m)
    l = jnp.sum(e, axis=-1, keepdims=True)
    p = e * pl.reciprocal(l, approx=True)                         # softmax (f32)
    o = jnp.dot(p.astype(v.dtype), v, preferred_element_type=jnp.float32)  # (N, D)
    o_ref[0] = o.astype(o_ref.dtype)


# ------------------------------ Pallas wrappers ------------------------------
def _linear_pallas(x_bf16, w_bf16, b_f32, out_dtype, *, tm_max=512):
    """x: (M, K) bf16, w: (K, Np) bf16 (Np multiple of 128), b: (1, Np) f32."""
    M, K = x_bf16.shape
    Kw, Np = w_bf16.shape
    assert K == Kw
    tm = min(tm_max, _round_up(M, 8))
    grid_m = pl.cdiv(M, tm)
    # TODO(synk): for large K (dim >= ~1k) tile the reduction axis with an f32 VMEM
    # accumulator + pl.when init/finalize; full-K blocks are fine at these sizes.
    return pl.pallas_call(
        _linear_kernel,
        out_shape=jax.ShapeDtypeStruct((M, Np), out_dtype),
        grid_spec=pltpu.PrefetchScalarGridSpec(
            num_scalar_prefetch=0,
            grid=(grid_m,),
            in_specs=[
                pl.BlockSpec((tm, K), lambda i: (i, 0)),
                pl.BlockSpec((K, Np), lambda i: (0, 0)),   # weight stays resident
                pl.BlockSpec((1, Np), lambda i: (0, 0)),
            ],
            out_specs=pl.BlockSpec((tm, Np), lambda i: (i, 0)),
        ),
        compiler_params=pltpu.CompilerParams(
            dimension_semantics=("parallel",)),
    )(x_bf16, w_bf16, b_f32)


def _attention_pallas(q, k, v, out_dtype):
    """q, k, v: (B*H, N, D) bf16 -> (B*H, N, D)."""
    BH, N, D = q.shape
    # TODO(synk): for long sequences switch to a flash-style online-softmax kernel
    # with a K/V reduction grid axis; whole-row softmax is fine at these sizes.
    return pl.pallas_call(
        _attention_kernel,
        out_shape=jax.ShapeDtypeStruct((BH, N, D), out_dtype),
        grid_spec=pltpu.PrefetchScalarGridSpec(
            num_scalar_prefetch=0,
            grid=(BH,),
            in_specs=[
                pl.BlockSpec((1, N, D), lambda i: (i, 0, 0)),
                pl.BlockSpec((1, N, D), lambda i: (i, 0, 0)),
                pl.BlockSpec((1, N, D), lambda i: (i, 0, 0)),
            ],
            out_specs=pl.BlockSpec((1, N, D), lambda i: (i, 0, 0)),
        ),
        compiler_params=pltpu.CompilerParams(
            dimension_semantics=("parallel",)),
    )(q, k, v)


# --------------------------------- module -----------------------------------
class AttentionPallas:
    """Multi-head self-attention: qkv Linear -> scaled softmax attention -> proj Linear."""

    def __init__(self, dim, num_heads=8, qkv_bias=False, qk_scale=None,
                 attn_drop_ratio=0.0, proj_drop_ratio=0.0, *, key=None):
        assert dim % num_heads == 0
        self.dim = dim
        self.num_heads = num_heads
        self.head_dim = dim // num_heads
        self.scale = qk_scale or self.head_dim ** (-0.5)
        # TODO(synk): attn_drop / proj_drop omitted — ratios are 0.0 (inference identity).

        key = jax.random.PRNGKey(0) if key is None else key
        k1, k2, k3, k4 = jax.random.split(key, 4)
        bound = 1.0 / (dim ** 0.5)
        # PyTorch nn.Linear layout: weight (out_features, in_features)
        self.w_qkv = jax.random.uniform(k1, (3 * dim, dim), jnp.float32, -bound, bound)
        self.b_qkv = (jax.random.uniform(k2, (3 * dim,), jnp.float32, -bound, bound)
                      if qkv_bias else jnp.zeros((3 * dim,), jnp.float32))
        self.w_proj = jax.random.uniform(k3, (dim, dim), jnp.float32, -bound, bound)
        self.b_proj = jax.random.uniform(k4, (dim,), jnp.float32, -bound, bound)

        # ---- precompute kernel-side operands ONCE (hoisted out of __call__) ----
        # Fold the softmax scale into the q rows of the QKV projection
        # (q' = scale * q  =>  scores = q' @ k^T already scaled).
        w_qkv_folded = self.w_qkv.at[:dim, :].multiply(self.scale)
        b_qkv_folded = self.b_qkv.at[:dim].multiply(self.scale)
        # Transpose to (in, out), pad out-features to a lane-dense multiple of 128,
        # cast weights to bf16 (MXU-native); biases stay f32 for the f32 epilogue.
        self.qkv_np = _round_up(3 * dim, 128)
        self.proj_np = _round_up(dim, 128)
        self.w_qkv_k = _pad_cols(w_qkv_folded.T, self.qkv_np).astype(jnp.bfloat16)
        self.b_qkv_k = _pad_cols(b_qkv_folded.reshape(1, -1), self.qkv_np)
        self.w_proj_k = _pad_cols(self.w_proj.T, self.proj_np).astype(jnp.bfloat16)
        self.b_proj_k = _pad_cols(self.b_proj.reshape(1, -1), self.proj_np)

    def __call__(self, x):
        B, N, C = x.shape
        H, D = self.num_heads, self.head_dim

        xf = x.reshape(B * N, C).astype(jnp.bfloat16)            # halve DMA bytes
        # QKV projection (scale pre-folded into q weight/bias).
        qkv = _linear_pallas(xf, self.w_qkv_k, self.b_qkv_k, jnp.bfloat16)[:, :3 * C]
        qkv = qkv.reshape(B, N, 3, H, D).transpose(2, 0, 3, 1, 4)  # (3, B, H, N, D)
        q = qkv[0].reshape(B * H, N, D)
        k = qkv[1].reshape(B * H, N, D)
        v = qkv[2].reshape(B * H, N, D)

        o = _attention_pallas(q, k, v, jnp.bfloat16)              # (B*H, N, D)
        o = o.reshape(B, H, N, D).transpose(0, 2, 1, 3).reshape(B * N, C)

        out = _linear_pallas(o, self.w_proj_k, self.b_proj_k, x.dtype)[:, :C]
        return out.reshape(B, N, C)

    # pure-JAX f32 reference for the correctness check
    def reference(self, x):
        B, N, C = x.shape
        H, D = self.num_heads, self.head_dim
        qkv = x @ self.w_qkv.T + self.b_qkv
        qkv = qkv.reshape(B, N, 3, H, D).transpose(2, 0, 3, 1, 4)
        q, k, v = qkv[0], qkv[1], qkv[2]
        attn = (q @ jnp.swapaxes(k, -2, -1)) * self.scale
        attn = jax.nn.softmax(attn, axis=-1)
        o = (attn @ v).transpose(0, 2, 1, 3).reshape(B, N, C)
        return o @ self.w_proj.T + self.b_proj


if __name__ == "__main__":
    key = jax.random.PRNGKey(0)
    kx, kp = jax.random.split(key)
    B, N, C, H = 2, 8, 32, 4           # batch=2, seq=8, hidden=32, 4 heads (head_dim=8)

    x = jax.random.normal(kx, (B, N, C), jnp.float32)
    attn = AttentionPallas(C, num_heads=H, key=kp)

    out = jax.block_until_ready(attn(x))
    ref = attn.reference(x)

    assert out.shape == ref.shape == (B, N, C)
    max_err = float(jnp.max(jnp.abs(out - ref)))
    # bf16 matmul operands (f32 accumulation) -> relaxed tolerance vs f32 reference.
    assert jnp.allclose(out, ref, atol=2e-2, rtol=2e-2), f"mismatch vs reference: {max_err}"

    print("KERNEL_OK")
</pallas_src>

<mosaic_0001>
module attributes {stable_mosaic.version = 11 : i64} {
  func.func @_linear_kernel(%arg0: i32, %arg1: memref<16x32xbf16, #tpu.memory_space<vmem>>, %arg2: memref<32x128xbf16, #tpu.memory_space<vmem>>, %arg3: memref<1x128xf32, #tpu.memory_space<vmem>>, %arg4: memref<16x128xbf16, #tpu.memory_space<vmem>>) attributes {dimension_semantics = [#tpu.dimension_semantics<parallel>], iteration_bounds = array<i64: 1>, scalar_prefetch = 0 : i64, scratch_operands = 0 : i64, tpu.core_type = #tpu.core_type<tc>, window_params = [{transform_indices = @transform_0, window_bounds = array<i64: 16, 32>}, {pipeline_mode = #tpu.pipeline_mode<synchronous>, transform_indices = @transform_1, window_bounds = array<i64: 32, 128>}, {pipeline_mode = #tpu.pipeline_mode<synchronous>, transform_indices = @transform_2, window_bounds = array<i64: 1, 128>}, {transform_indices = @transform_3, window_bounds = array<i64: 16, 128>}]} {
    %c0 = arith.constant 0 : index
    %c0_0 = arith.constant 0 : index
    %0 = vector.load %arg1[%c0, %c0_0] : memref<16x32xbf16, #tpu.memory_space<vmem>>, vector<16x32xbf16>
    %c0_1 = arith.constant 0 : index
    %c0_2 = arith.constant 0 : index
    %1 = vector.load %arg2[%c0_1, %c0_2] : memref<32x128xbf16, #tpu.memory_space<vmem>>, vector<32x128xbf16>
    %cst = arith.constant dense<0.000000e+00> : vector<16x128xf32>
    %2 = tpu.matmul %0, %1, %cst {dimension_numbers = #tpu.dot_dimension_numbers<[1], [0], [0], [1], [0, 0, 1, 1], [], []>} : vector<16x32xbf16>, vector<32x128xbf16>, vector<16x128xf32> -> vector<16x128xf32>
    %c0_3 = arith.constant 0 : index
    %c0_4 = arith.constant 0 : index
    %3 = vector.load %arg3[%c0_3, %c0_4] : memref<1x128xf32, #tpu.memory_space<vmem>>, vector<1x128xf32>
    %4 = vector.broadcast %3 : vector<1x128xf32> to vector<16x128xf32>
    %5 = arith.addf %2, %4 : vector<16x128xf32>
    %6 = arith.truncf %5 : vector<16x128xf32> to vector<16x128xbf16>
    %c0_5 = arith.constant 0 : index
    %c0_6 = arith.constant 0 : index
    %7 = vector.load %arg4[%c0_5, %c0_6] : memref<16x128xbf16, #tpu.memory_space<vmem>>, vector<16x128xbf16>
    tpu.vector_store %arg4[%c0_5, %c0_6], %6 {strides = array<i32>} : memref<16x128xbf16, #tpu.memory_space<vmem>>, vector<16x128xbf16>,
    return
  }
  func.func @transform_0(%arg0: i32) -> (i32, i32) {
    %c0_i32 = arith.constant 0 : i32
    %c0_i32_0 = arith.constant 0 : i32
    return %arg0, %c0_i32 : i32, i32
  }
  func.func @transform_1(%arg0: i32) -> (i32, i32) {
    %c0_i32 = arith.constant 0 : i32
    %c0_i32_0 = arith.constant 0 : i32
    %c0_i32_1 = arith.constant 0 : i32
    return %c0_i32, %c0_i32_0 : i32, i32
  }
  func.func @transform_2(%arg0: i32) -> (i32, i32) {
    %c0_i32 = arith.constant 0 : i32
    %c0_i32_0 = arith.constant 0 : i32
    %c0_i32_1 = arith.constant 0 : i32
    return %c0_i32, %c0_i32_0 : i32, i32
  }
  func.func @transform_3(%arg0: i32) -> (i32, i32) {
    %c0_i32 = arith.constant 0 : i32
    %c0_i32_0 = arith.constant 0 : i32
    return %arg0, %c0_i32 : i32, i32
  }
}

</mosaic_0001>

<llo_original>
// kernel: tpu_custom_call.1
$region0: #{tpu_custom_call.1}
  #allocation0 [shape = 'u32[]', space=smem, size = 0x4, offset = 0x4, fixed_abs, tag = 'smem constant byte address 0x4 - core index']
  #allocation1 [shape = 'u32[144,128]{1,0:T(1,128)}', space=vmem, size = 0x12000, scoped, tag = 'internal scratch']
  %s0 = inlined_call_operand.hbm [shape: bf16[16,32], index: 0, kind: input, shape index: {}]
  %s1 = inlined_call_operand.hbm [shape: bf16[32,128], index: 1, kind: input, shape index: {}]
  %s2 = inlined_call_operand.vmem [shape: f32[1,128], index: 2, kind: input, shape index: {}]
  %s3 = inlined_call_operand.hbm [shape: bf16[16,128], index: 3, kind: output, shape index: {}]
  %s4 = sld [smem:[#allocation0]]
  $region30: #{tpu_custom_call.1} parent=0
    _
  %s6 = ssub.s32 1, %s4
  %s7 = scalar_select 0, %s6, %s4
  $region1: #{tpu_custom_call.1} parent=0
    #allocation2 [shape = 'u8[4096]{0}', space=vmem, size = 0x1000, scoped, tag = 'input window, operand 0, single buffered']
    #allocation3 [shape = 's32[1]{0}', space=sflag, size = 0x4, scoped, tag = 'scoped memory for tpu_custom_call.1']
    #allocation4 [shape = 's32[1]{0}', space=sflag, size = 0x4, scoped, tag = 'scoped memory for tpu_custom_call.1']
    #allocation5 [shape = 'u8[8192]{0}', space=vmem, size = 0x2000, scoped, tag = 'input window, operand 1, single buffered']
    #allocation6 [shape = 's32[1]{0}', space=sflag, size = 0x4, scoped, tag = 'scoped memory for tpu_custom_call.1']
    #allocation7 [shape = 'u8[4096]{0}', space=vmem, size = 0x1000, scoped, tag = 'output window, operand 0, single buffered']
    %8 = vsyncpa [#allocation3], 0
    %9 = vsyncpa [#allocation6], 0
    %10 = vsyncpa [#allocation4], 0
    // Predicated region
    $region2: #{tpu_custom_call.1} parent=1 // pred_check
      _
    $region3: #{tpu_custom_call.1} parent=1 // pred_check_branch
      %12 = sbr.rel (0) target = $region5
    $region4: #{tpu_custom_call.1} parent=1 // pred_region
      %s14 = ssub.s32 128, 128
      %15 = vsyncadd [#allocation3], %s14
      %s16 = sshll.u32 [#allocation2], 4
      %s17 = int_to_ptr.vmem [resolvable:$true] %s16
      %22 = dma.hbm_to_vmem [thread:$0]  %s0, 128, %s17, [#allocation3], 64, 64, 4
    $region5: #{tpu_custom_call.1} parent=1 // pred_fallthru
      _
    // Predicated region
    $region6: #{tpu_custom_call.1} parent=1 // pred_check
      _
    $region7: #{tpu_custom_call.1} parent=1 // pred_check_branch
      %24 = sbr.rel (0) target = $region9
    $region8: #{tpu_custom_call.1} parent=1 // pred_region
      %s26 = ssub.s32 256, 256
      %27 = vsyncadd [#allocation6], %s26
      %s28 = sshll.u32 [#allocation5], 4
      %s29 = int_to_ptr.vmem [resolvable:$true] %s28
      %34 = dma.hbm_to_vmem [thread:$0]  %s1, 256, %s29, [#allocation6], 64, 64, 4
    $region9: #{tpu_custom_call.1} parent=1 // pred_fallthru
      _
    // Predicated region
    $region10: #{tpu_custom_call.1} parent=1 // pred_check
      _
    $region11: #{tpu_custom_call.1} parent=1 // pred_check_branch
      %36 = sbr.rel (0) target = $region13
    $region12: #{tpu_custom_call.1} parent=1 // pred_region
      _
    $region13: #{tpu_custom_call.1} parent=1 // pred_fallthru
      _
    // Predicated region
    $region14: #{tpu_custom_call.1} parent=1 // pred_check
      _
    $region15: #{tpu_custom_call.1} parent=1 // pred_check_branch
      %38 = sbr.rel (0) target = $region17
    $region16: #{tpu_custom_call.1} parent=1 // pred_region
      %39 = dma.done [#allocation3], 128
    $region17: #{tpu_custom_call.1} parent=1 // pred_fallthru
      _
    // Predicated region
    $region18: #{tpu_custom_call.1} parent=1 // pred_check
      _
    $region19: #{tpu_custom_call.1} parent=1 // pred_check_branch
      %41 = sbr.rel (0) target = $region21
    $region20: #{tpu_custom_call.1} parent=1 // pred_region
      %42 = dma.done [#allocation6], 256
    $region21: #{tpu_custom_call.1} parent=1 // pred_fallthru
      _
    %v44 = vld [vmem:[#allocation2] sm:$0xf]
    %v45 = vld [vmem:[#allocation2 + $0x4] sm:$0xf]
    %v46 = vld [vmem:[#allocation5] sm:$0xf]
    %v47 = vld [vmem:[#allocation5 + $0x4] sm:$0xf]
    %v48 = vld [vmem:[#allocation5 + $0x8] sm:$0xf]
    %v49 = vld [vmem:[#allocation5 + $0xc] sm:$0xf]
    %v50 = vld [vmem:[%s2] sm:$0x1]
    %v52 = vlaneseq
    %v53 = vshrl.u32 %v52, 7
    %v54 = vsub.s32 0, %v53
    %v55 = vrot.slane %v50, %v54
    %v59 = vunpack.c.l.b16 %v44
    %v60 = vunpack.c.l.b16 %v45
    %v61 = vpack.c.b16 %v60, %v59
    %v66 = vunpack.c.l.b16 %v46
    %v67 = vunpack.c.l.b16 %v47
    %v68 = vunpack.c.l.b16 %v48
    %v69 = vunpack.c.l.b16 %v49
    %v70 = vpack.c.b16 %v67, %v66
    %v71 = vpack.c.b16 %v69, %v68
    %vm74 = vcmask 261120
    %v76 = vsel %vm74, %v61, 0
    %78 = vmatprep.subr.bf16.mxu0 0
    %79 = vmatpush1.bf16.msra.mxu0 0
    %80 = vmatprep.subr.bf16.mxu0 0
    %81 = vmatpush1.bf16.msra.mxu0 0
    %82 = vmatprep.subr.bf16.mxu0 0
    %83 = vmatpush1.bf16.msra.mxu0 0
    %84 = vmatprep.subr.bf16.mxu0 0
    %85 = vmatpush1.bf16.msra.mxu0 0
    %86 = vmatprep.subr.bf16.mxu0 0
    %87 = vmatpush1.bf16.msra.mxu0 0
    %88 = vmatprep.subr.bf16.mxu0 0
    %89 = vmatpush1.bf16.msra.mxu0 0
    %90 = vmatprep.subr.bf16.mxu0 0
    %91 = vmatpush1.bf16.msra.mxu0 %v71
    %92 = vmatprep.subr.bf16.mxu0 0
    %93 = vmatpush1.bf16.msra.mxu0 %v70
    %94 = vmatprep.subr.bf16.mxu0 0
    %95 = vmatpush2.bf16.msra.mxu0 0
    %96 = vmatprep.subr.bf16.mxu0 0
    %97 = vmatpush2.bf16.msra.mxu0 0
    %98 = vmatprep.subr.bf16.mxu0 0
    %99 = vmatpush2.bf16.msra.mxu0 0
    %100 = vmatprep.subr.bf16.mxu0 0
    %101 = vmatpush2.bf16.msra.mxu0 0
    %102 = vmatprep.subr.bf16.mxu0 0
    %103 = vmatpush2.bf16.msra.mxu0 0
    %104 = vmatprep.subr.bf16.mxu0 0
    %105 = vmatpush2.bf16.msra.mxu0 0
    %106 = vmatprep.subr.bf16.mxu0 0
    %107 = vmatpush2.bf16.msra.mxu0 0
    %108 = vmatprep.subr.bf16.mxu0 0
    %109 = vmatpush2.bf16.msra.mxu0 0
    %110 = vmatprep.mubr.bf16.mxu0 0
    %111 = vmatmul.mubr.bf16.gmra.mxu0 %v76
    %v112 = vpop.f32.mrf.mxu0
    %v113 = vadd.f32 %v55, %v112
    %v114 = vpop.f32.mrf.mxu0
    %v115 = vpop.f32.mrf.mxu0
    %v116 = vadd.f32 %v55, %v115
    %v117 = vpop.f32.mrf.mxu0
    %118 = vdwg.mxu0
    %v119 = vpack.c.bf16 %v116, %v113
    %v121 = vunpack.c.l.b16 %v119
    %v122 = vunpack.c.h.b16 %v119
    %v123 = vpack.c.b16 %v121, %v121
    %v124 = vpack.c.b16 %v122, %v122
    %127 = vst [vmem:[#allocation7] sm:$0xf] %v123
    %128 = vst [vmem:[#allocation7 + $0x4] sm:$0xf] %v124
    // Predicated region
    $region22: #{tpu_custom_call.1} parent=1 // pred_check
      _
    $region23: #{tpu_custom_call.1} parent=1 // pred_check_branch
      %130 = sbr.rel (0) target = $region25
    $region24: #{tpu_custom_call.1} parent=1 // pred_region
      %s132 = ssub.s32 128, 128
      %133 = vsyncadd [#allocation4], %s132
      %s134 = sshll.u32 [#allocation7], 4
      %s135 = int_to_ptr.vmem [resolvable:$true] %s134
      %140 = dma.vmem_to_hbm [thread:$0]  %s135, 128, %s3, [#allocation4], 64, 64, 4
    $region25: #{tpu_custom_call.1} parent=1 // pred_fallthru
      _
    // Predicated region
    $region26: #{tpu_custom_call.1} parent=1 // pred_check
      _
    $region27: #{tpu_custom_call.1} parent=1 // pred_check_branch
      %142 = sbr.rel (0) target = $region29
    $region28: #{tpu_custom_call.1} parent=1 // pred_region
      %143 = dma.done [#allocation4], 128
    $region29: #{tpu_custom_call.1} parent=1 // pred_fallthru
      _
    %144 = vsyncpa [#allocation3], 1
    %145 = vsyncpa [#allocation6], 1
    %146 = vsyncpa [#allocation4], 1

</llo_original>
